<compile_context>
chip_gen: v6e
topology: v6e:2x2x1
jax: 0.10.0
libtpu: 0.0.40
codegen_flags: <defaults>
</compile_context>

<pallas_src>
import functools
import math

import jax
import jax.numpy as jnp
from jax.experimental import pallas as pl
from jax.experimental.pallas import tpu as pltpu

_LANES = 128


def _bayes_predict_kernel(params_ref, slab_ref, out_ref, *, inv_s):
    # params (SMEM): [w_mu, w_log_sigma, additive_noise] — the module __init__ values.
    w_mu = params_ref[0]
    sigma = jnp.exp(params_ref[1])          # single scalar exp, before any vector op
    a_noise = params_ref[2]

    # Single [16, W] input slab (ONE input DMA).  Wrapper layout:
    #   rows 0..7  ("A"): [x, eps_w, eps_n, eps_w, eps_n, eps_w, 0, 0]
    #   rows 8..15 ("B"): [0, 1,     1,     eps_w, eps_n, eps_n, 0, 0]
    # so one elementwise product + ONE lane reduction yields every moment sum.
    a = slab_ref[0:8, :]                    # [8, W]
    b = slab_ref[8:16, :]                   # [8, W]
    x = slab_ref[0:1, :]                    # [1, W] lane-dense x row

    # Packed lane reduction.  Padding lanes hold zeros, so dividing by the TRUE
    # sample count (inv_s, baked in by the wrapper) keeps the statistics unbiased.
    sums = jnp.sum(a * b, axis=1, keepdims=True) * inv_s     # [8, 1]
    m = jnp.broadcast_to(sums, (8, a.shape[1]))              # lane-broadcast once

    m_w = m[1:2, :]      # E[eps_w]
    m_n = m[2:3, :]      # E[eps_n]
    m_ww = m[3:4, :]     # E[eps_w^2]
    m_nn = m[4:5, :]     # E[eps_n^2]
    m_wn = m[5:6, :]     # E[eps_w * eps_n]

    # Centered-eps second moments: eps is zero-mean O(1), so no catastrophic
    # cancellation regardless of where w_mu / additive_noise end up after training.
    var_ew = m_ww - m_w * m_w
    var_en = m_nn - m_n * m_n
    cov_e = m_wn - m_w * m_n

    # w = w_mu + sigma*eps_w, noise = a*eps_n  =>  analytic sample statistics.
    e_w = w_mu + sigma * m_w
    e_n = a_noise * m_n
    var_w = (sigma * sigma) * var_ew
    var_n = (a_noise * a_noise) * var_en
    cov_wn = (sigma * a_noise) * cov_e

    # Closed-form mean / std over the MC samples (prediction is affine in x, P == 1).
    mean = x * e_w + e_n                                      # [1, W]
    var = (x * x) * var_w + 2.0 * x * cov_wn + var_n          # ddof=0 (np.std)
    out_ref[0:1, :] = mean
    out_ref[1:2, :] = jnp.sqrt(jnp.maximum(var, 0.0))         # clamp f32 round-off


def bayes_predict(params, x, eps_w, eps_n):
    """params: [3] f32 (w_mu, log w_sigma, additive_noise); x: [N,1]; eps_*: [S,1].

    Returns (mean_pred, sd), each [N,1] — the per-point MC mean/std of predict().
    """
    n = int(x.shape[0])
    s = int(eps_w.shape[0])
    w = max(pl.cdiv(n, _LANES), pl.cdiv(s, _LANES)) * _LANES  # lane-dense width

    def row(v):
        v = jnp.asarray(v, jnp.float32).reshape(-1)
        return jnp.pad(v, (0, w - v.shape[0]))

    x_r = row(x)
    ew_r = row(eps_w)
    en_r = row(eps_n)
    ones_r = jnp.ones((w,), jnp.float32)
    zero_r = jnp.zeros((w,), jnp.float32)

    # Single input slab — pure layout plumbing (row duplication / zero padding only).
    slab = jnp.stack(
        [x_r, ew_r, en_r, ew_r, en_r, ew_r, zero_r, zero_r,        # "A" half
         zero_r, ones_r, ones_r, ew_r, en_r, en_r, zero_r, zero_r],  # "B" half
        axis=0)                                                     # [16, W]

    out = pl.pallas_call(
        functools.partial(_bayes_predict_kernel, inv_s=1.0 / s),
        out_shape=jax.ShapeDtypeStruct((2, w), jnp.float32),   # row 0 = mean, row 1 = sd
        in_specs=[
            pl.BlockSpec(memory_space=pltpu.SMEM),              # 3 scalar params
            pl.BlockSpec(memory_space=pltpu.VMEM),              # one [16, W] slab
        ],
        out_specs=pl.BlockSpec(memory_space=pltpu.VMEM),        # one [2, W] slab
    )(jnp.asarray(params, jnp.float32), slab)

    return out[0, :n].reshape(n, 1), out[1, :n].reshape(n, 1)


def _reference(params, x, eps_w, eps_n):
    # Pure-JAX reference that materializes the [S, N] MC prediction stack,
    # exactly mirroring predict()'s np.mean / np.std (ddof=0) semantics.
    w_mu, w_log_sigma, additive_noise = params[0], params[1], params[2]
    w = w_mu + jnp.exp(w_log_sigma) * eps_w[:, 0]             # [S]
    noise = additive_noise * eps_n[:, 0]                      # [S] one draw per sample
    pred = w[:, None] * x[None, :, 0] + noise[:, None]        # [S, N]
    return (jnp.mean(pred, axis=0).reshape(-1, 1),
            jnp.std(pred, axis=0).reshape(-1, 1))


if __name__ == "__main__":
    NUM_POINTS = 100   # predict() num_points
    NUM_SAMPLES = 100  # predict() num_nns

    key = jax.random.PRNGKey(0)
    k_w, k_n = jax.random.split(key)

    # Deterministic module parameters, exactly as __init__ builds them:
    #   w_mu = zeros((1,1)); w_sigma = log(0.1)*ones((1,1)); additive_noise = ones(1)
    params = jnp.array([0.0, math.log(0.1), 1.0], dtype=jnp.float32)

    # predict() builds X = linspace(domain) as a column vector; eps_* are the
    # reparameterized MC draws (host RNG so the reference check is exact).
    x = jnp.linspace(-3.0, 3.0, NUM_POINTS, dtype=jnp.float32).reshape(NUM_POINTS, 1)
    eps_w = jax.random.normal(k_w, (NUM_SAMPLES, 1), dtype=jnp.float32)
    eps_n = jax.random.normal(k_n, (NUM_SAMPLES, 1), dtype=jnp.float32)

    mean_pred, sd = bayes_predict(params, x, eps_w, eps_n)
    jax.block_until_ready((mean_pred, sd))

    mean_ref, sd_ref = _reference(params, x, eps_w, eps_n)
    assert jnp.allclose(mean_pred, mean_ref, atol=1e-4, rtol=1e-4)
    assert jnp.allclose(sd, sd_ref, atol=1e-4, rtol=1e-4)

    print("KERNEL_OK")
</pallas_src>

<mosaic_0001>
module attributes {stable_mosaic.version = 11 : i64} {
  func.func @_bayes_predict_kernel(%arg0: memref<3xf32, #tpu.memory_space<smem>>, %arg1: memref<16x128xf32, #tpu.memory_space<vmem>>, %arg2: memref<2x128xf32, #tpu.memory_space<vmem>>) attributes {dimension_semantics = [], scalar_prefetch = 0 : i64, scratch_operands = 0 : i64, tpu.core_type = #tpu.core_type<tc>} {
    %c0 = arith.constant 0 : index
    %0 = memref.load %arg0[%c0] : memref<3xf32, #tpu.memory_space<smem>>
    %c1 = arith.constant 1 : index
    %1 = memref.load %arg0[%c1] : memref<3xf32, #tpu.memory_space<smem>>
    %2 = math.exp %1 : f32
    %c2 = arith.constant 2 : index
    %3 = memref.load %arg0[%c2] : memref<3xf32, #tpu.memory_space<smem>>
    %c0_0 = arith.constant 0 : index
    %c0_1 = arith.constant 0 : index
    %4 = vector.load %arg1[%c0_0, %c0_1] : memref<16x128xf32, #tpu.memory_space<vmem>>, vector<8x128xf32>
    %c8 = arith.constant 8 : index
    %c0_2 = arith.constant 0 : index
    %5 = vector.load %arg1[%c8, %c0_2] : memref<16x128xf32, #tpu.memory_space<vmem>>, vector<8x128xf32>
    %c0_3 = arith.constant 0 : index
    %c0_4 = arith.constant 0 : index
    %6 = vector.load %arg1[%c0_3, %c0_4] : memref<16x128xf32, #tpu.memory_space<vmem>>, vector<1x128xf32>
    %7 = arith.mulf %4, %5 : vector<8x128xf32>
    %cst = arith.constant dense<0.000000e+00> : vector<8xf32>
    %8 = vector.multi_reduction <add>, %7, %cst [1] : vector<8x128xf32> to vector<8xf32>
    %9 = vector.shape_cast %8 : vector<8xf32> to vector<8x1xf32>
    %cst_5 = arith.constant 0.00999999977 : f32
    %10 = vector.broadcast %cst_5 : f32 to vector<8x1xf32>
    %11 = arith.mulf %9, %10 : vector<8x1xf32>
    %12 = vector.shape_cast %11 : vector<8x1xf32> to vector<8x1xf32>
    %13 = vector.broadcast %12 : vector<8x1xf32> to vector<8x128xf32>
    %14 = vector.extract_strided_slice %13 {offsets = [1, 0], sizes = [1, 128], strides = [1, 1]} : vector<8x128xf32> to vector<1x128xf32>
    %15 = vector.extract_strided_slice %13 {offsets = [2, 0], sizes = [1, 128], strides = [1, 1]} : vector<8x128xf32> to vector<1x128xf32>
    %16 = vector.extract_strided_slice %13 {offsets = [3, 0], sizes = [1, 128], strides = [1, 1]} : vector<8x128xf32> to vector<1x128xf32>
    %17 = vector.extract_strided_slice %13 {offsets = [4, 0], sizes = [1, 128], strides = [1, 1]} : vector<8x128xf32> to vector<1x128xf32>
    %18 = vector.extract_strided_slice %13 {offsets = [5, 0], sizes = [1, 128], strides = [1, 1]} : vector<8x128xf32> to vector<1x128xf32>
    %19 = arith.mulf %14, %14 : vector<1x128xf32>
    %20 = arith.subf %16, %19 : vector<1x128xf32>
    %21 = arith.mulf %15, %15 : vector<1x128xf32>
    %22 = arith.subf %17, %21 : vector<1x128xf32>
    %23 = arith.mulf %14, %15 : vector<1x128xf32>
    %24 = arith.subf %18, %23 : vector<1x128xf32>
    %25 = vector.broadcast %2 : f32 to vector<1x128xf32>
    %26 = arith.mulf %25, %14 : vector<1x128xf32>
    %27 = vector.broadcast %0 : f32 to vector<1x128xf32>
    %28 = arith.addf %27, %26 : vector<1x128xf32>
    %29 = vector.broadcast %3 : f32 to vector<1x128xf32>
    %30 = arith.mulf %29, %15 : vector<1x128xf32>
    %31 = arith.mulf %2, %2 : f32
    %32 = vector.broadcast %31 : f32 to vector<1x128xf32>
    %33 = arith.mulf %32, %20 : vector<1x128xf32>
    %34 = arith.mulf %3, %3 : f32
    %35 = vector.broadcast %34 : f32 to vector<1x128xf32>
    %36 = arith.mulf %35, %22 : vector<1x128xf32>
    %37 = arith.mulf %2, %3 : f32
    %38 = vector.broadcast %37 : f32 to vector<1x128xf32>
    %39 = arith.mulf %38, %24 : vector<1x128xf32>
    %40 = arith.mulf %6, %28 : vector<1x128xf32>
    %41 = arith.addf %40, %30 : vector<1x128xf32>
    %42 = arith.mulf %6, %6 : vector<1x128xf32>
    %43 = arith.mulf %42, %33 : vector<1x128xf32>
    %cst_6 = arith.constant 2.000000e+00 : f32
    %44 = vector.broadcast %cst_6 : f32 to vector<1x128xf32>
    %45 = arith.mulf %44, %6 : vector<1x128xf32>
    %46 = arith.mulf %45, %39 : vector<1x128xf32>
    %47 = arith.addf %43, %46 : vector<1x128xf32>
    %48 = arith.addf %47, %36 : vector<1x128xf32>
    %c0_7 = arith.constant 0 : index
    %c0_8 = arith.constant 0 : index
    %49 = vector.load %arg2[%c0_7, %c0_8] : memref<2x128xf32, #tpu.memory_space<vmem>>, vector<1x128xf32>
    tpu.vector_store %arg2[%c0_7, %c0_8], %41 {strides = array<i32>} : memref<2x128xf32, #tpu.memory_space<vmem>>, vector<1x128xf32>,
    %cst_9 = arith.constant 0.000000e+00 : f32
    %50 = vector.broadcast %cst_9 : f32 to vector<1x128xf32>
    %51 = arith.maximumf %48, %50 : vector<1x128xf32>
    %52 = math.sqrt %51 : vector<1x128xf32>
    %c1_10 = arith.constant 1 : index
    %c0_11 = arith.constant 0 : index
    %53 = vector.load %arg2[%c1_10, %c0_11] : memref<2x128xf32, #tpu.memory_space<vmem>>, vector<1x128xf32>
    tpu.vector_store %arg2[%c1_10, %c0_11], %52 {strides = array<i32>} : memref<2x128xf32, #tpu.memory_space<vmem>>, vector<1x128xf32>,
    return
  }
}

</mosaic_0001>

<llo_original>
// kernel: tpu_custom_call.1
$region0: #{tpu_custom_call.1}
  #allocation0 [shape = 'u32[]', space=smem, size = 0x4, offset = 0x4, fixed_abs, tag = 'smem constant byte address 0x4 - core index']
  #allocation1 [shape = 'u32[144,128]{1,0:T(1,128)}', space=vmem, size = 0x12000, scoped, tag = 'internal scratch']
  %s0 = inlined_call_operand.hbm [shape: f32[3], index: 0, kind: input, shape index: {}]
  %s1 = inlined_call_operand.hbm [shape: f32[16,128], index: 1, kind: input, shape index: {}]
  %s2 = inlined_call_operand.hbm [shape: f32[2,128], index: 2, kind: output, shape index: {}]
  %s3 = sld [smem:[#allocation0]]
  $region26: #{tpu_custom_call.1} parent=0
    _
  %s5 = ssub.s32 1, %s3
  %s6 = scalar_select 0, %s5, %s3
  $region1: #{tpu_custom_call.1} parent=0
    #allocation2 [shape = 'u8[512]{0}', space=smem, size = 0x200, scoped, tag = 'input window, operand 0, single buffered']
    #allocation3 [shape = 's32[1]{0}', space=sflag, size = 0x4, scoped, tag = 'scoped memory for tpu_custom_call.1']
    #allocation4 [shape = 's32[1]{0}', space=sflag, size = 0x4, scoped, tag = 'scoped memory for tpu_custom_call.1']
    #allocation5 [shape = 's32[1]{0}', space=sflag, size = 0x4, scoped, tag = 'scoped memory for tpu_custom_call.1']
    #allocation6 [shape = 'u8[8192]{0}', space=vmem, size = 0x2000, scoped, tag = 'input window, operand 1, single buffered']
    #allocation7 [shape = 'u8[1024]{0}', space=vmem, size = 0x400, scoped, tag = 'output window, operand 0, single buffered']
    %7 = vsyncpa [#allocation5], 0
    %8 = vsyncpa [#allocation3], 0
    %9 = vsyncpa [#allocation4], 0
    // Predicated region
    $region2: #{tpu_custom_call.1} parent=1 // pred_check
      _
    $region3: #{tpu_custom_call.1} parent=1 // pred_check_branch
      %11 = sbr.rel (0) target = $region5
    $region4: #{tpu_custom_call.1} parent=1 // pred_region
      %s13 = ssub.s32 16, 16
      %14 = vsyncadd [#allocation5], %s13
      %17 = dma.hbm_to_smem %s0, 16, [#allocation2], [#allocation5]
    $region5: #{tpu_custom_call.1} parent=1 // pred_fallthru
      _
    // Predicated region
    $region6: #{tpu_custom_call.1} parent=1 // pred_check
      _
    $region7: #{tpu_custom_call.1} parent=1 // pred_check_branch
      %19 = sbr.rel (0) target = $region9
    $region8: #{tpu_custom_call.1} parent=1 // pred_region
      %s21 = ssub.s32 256, 256
      %22 = vsyncadd [#allocation3], %s21
      %s23 = sshll.u32 [#allocation6], 4
      %s24 = int_to_ptr.vmem [resolvable:$true] %s23
      %29 = dma.hbm_to_vmem [thread:$0]  %s1, 256, %s24, [#allocation3], 128, 128, 8
    $region9: #{tpu_custom_call.1} parent=1 // pred_fallthru
      _
    // Predicated region
    $region10: #{tpu_custom_call.1} parent=1 // pred_check
      _
    $region11: #{tpu_custom_call.1} parent=1 // pred_check_branch
      %31 = sbr.rel (0) target = $region13
    $region12: #{tpu_custom_call.1} parent=1 // pred_region
      %32 = dma.done [#allocation5], 16
    $region13: #{tpu_custom_call.1} parent=1 // pred_fallthru
      _
    // Predicated region
    $region14: #{tpu_custom_call.1} parent=1 // pred_check
      _
    $region15: #{tpu_custom_call.1} parent=1 // pred_check_branch
      %34 = sbr.rel (0) target = $region17
    $region16: #{tpu_custom_call.1} parent=1 // pred_region
      %35 = dma.done [#allocation3], 256
    $region17: #{tpu_custom_call.1} parent=1 // pred_fallthru
      _
    %36 = sfence
    %s37 = sld [smem:[#allocation2]]
    %s38 = sld [smem:[#allocation2 + $0x1]]
    %v39 = vstv %s38
    %v40 = vmul.f32 %v39, 1.442695
    %v41 = vpow.pop %v40
    %s42 = vtos %v41
    %s43 = sld [smem:[#allocation2 + $0x2]]
    %v44 = vld [vmem:[#allocation6] sm:$0xff]
    %v45 = vld [vmem:[#allocation6 + $0x8] sm:$0xff]
    %v46 = vld [vmem:[#allocation6] sm:$0x1]
    %v47 = vmul.f32 %v44, %v45
    %48 = vadd.xlane.f32.xlu0 %v47
    %v49 = vpop.xlane.xlu0 %48
    %v50 = vmul.f32 %v49, 0.01
    %v51 = vmul.f32 %v50, %v50
    %v53 = vrot.slane %v51, 6
    %v55 = vsub.f32 %v50, %v53
    %v57 = vrot.slane %v50, 1
    %v59 = vmul.f32 %v50, %v57
    %v61 = vrot.slane %v59, 4
    %v63 = vsub.f32 %v50, %v61
    %v64 = vstv %s42
    %v65 = vmul.f32 %v64, %v50
    %v66 = vstv %s37
    %v67 = vadd.f32 %v66, %v65
    %v68 = vstv %s43
    %v69 = vmul.f32 %v68, %v50
    %s70 = smul.f32 %s42, %s42
    %v71 = vstv %s70
    %v72 = vmul.f32 %v71, %v55
    %s73 = smul.f32 %s43, %s43
    %v74 = vstv %s73
    %v75 = vmul.f32 %v74, %v55
    %s76 = smul.f32 %s42, %s43
    %v77 = vstv %s76
    %v78 = vmul.f32 %v77, %v63
    %v80 = vrot.slane %v67, 1
    %v82 = vmul.f32 %v46, %v80
    %v84 = vrot.slane %v69, 2
    %v86 = vadd.f32 %v82, %v84
    %v87 = vmul.f32 %v46, %v46
    %v89 = vrot.slane %v72, 3
    %v91 = vmul.f32 %v87, %v89
    %v92 = vmul.f32 %v46, 2.0
    %v94 = vrot.slane %v78, 5
    %v96 = vmul.f32 %v92, %v94
    %v97 = vadd.f32 %v91, %v96
    %v99 = vrot.slane %v75, 4
    %v101 = vadd.f32 %v97, %v99
    %102 = vst [vmem:[#allocation7] sm:$0x1] %v86
    %v103 = vmax.f32 %v101, 0.0
    %v104 = vrsqrt.pop %v103
    %v105 = vmul.f32 %v103, %v104
    %vm106 = vcmp.eq.f32.partialorder %v103, inf
    %v107 = vsel %vm106, %v103, %v105
    %vm108 = vcmp.eq.f32.partialorder %v103, 0.0
    %v109 = vand.u32 %v103, 2147483648
    %v110 = vsel %vm108, %v109, %v107
    %111 = vst [vmem:[#allocation7 + $0x1] sm:$0x1] %v110
    // Predicated region
    $region18: #{tpu_custom_call.1} parent=1 // pred_check
      _
    $region19: #{tpu_custom_call.1} parent=1 // pred_check_branch
      %113 = sbr.rel (0) target = $region21
    $region20: #{tpu_custom_call.1} parent=1 // pred_region
      %s115 = ssub.s32 32, 32
      %116 = vsyncadd [#allocation4], %s115
      %s118 = sshll.u32 [#allocation7], 4
      %s119 = int_to_ptr.vmem [resolvable:$true] %s118
      %121 = dma.vmem_to_hbm [thread:$0]  %s119, 32, %s2, [#allocation4]
    $region21: #{tpu_custom_call.1} parent=1 // pred_fallthru
      _
    // Predicated region
    $region22: #{tpu_custom_call.1} parent=1 // pred_check
      _
    $region23: #{tpu_custom_call.1} parent=1 // pred_check_branch
      %123 = sbr.rel (0) target = $region25
    $region24: #{tpu_custom_call.1} parent=1 // pred_region
      %124 = dma.done [#allocation4], 32
    $region25: #{tpu_custom_call.1} parent=1 // pred_fallthru
      _
    %125 = vsyncpa [#allocation3], 1
    %126 = vsyncpa [#allocation4], 1
    %127 = vsyncpa [#allocation5], 1

</llo_original>
